<compile_context>
chip_gen: v6e
topology: v6e:2x2x1
jax: 0.10.0
libtpu: 0.0.40
codegen_flags: <defaults>
</compile_context>

<pallas_src>
import jax
import jax.numpy as jnp
from jax.experimental import pallas as pl
from jax.experimental.pallas import tpu as pltpu


# ----------------------------- Pallas kernel -------------------------------

def _moe_kernel(slot_id_ref, nact_ref, x_ref, w1_ref, w2_ref, wts_ref,
                o_ref, acc_ref):
    """Grid: (token_tiles ["parallel"], expert_slots ["arbitrary", reduction])."""
    s = pl.program_id(1)                     # expert-slot index (last axis)

    @pl.when(s == 0)
    def _init():
        acc_ref[...] = jnp.zeros_like(acc_ref)

    @pl.when(s < nact_ref[0])                # skip padded (inactive) slots
    def _compute():
        x = x_ref[...]                       # (tT, H)  bf16
        w1 = w1_ref[0]                       # (2I, H)  bf16
        # (tT,H) x (2I,H) contracting last dims -> (tT, 2I); no in-kernel .T
        h1 = jax.lax.dot_general(
            x, w1, dimension_numbers=(((1,), (1,)), ((), ())),
            preferred_element_type=jnp.float32)

        inter = w2_ref.shape[-1]
        gate = h1[:, :inter]
        up = h1[:, inter:]
        act = (gate * jax.nn.sigmoid(gate)) * up        # SiluAndMul, f32

        w2 = w2_ref[0]                       # (H, I)  bf16
        y = jax.lax.dot_general(
            act.astype(w2.dtype), w2,
            dimension_numbers=(((1,), (1,)), ((), ())),
            preferred_element_type=jnp.float32)         # (tT, H) f32

        # Per-token routing weight for this slot, selected from the resident
        # (tT, E) table via a masked lane-reduce (no lane-width-1 DMA).
        slot_ids = jax.lax.broadcasted_iota(jnp.int32, wts_ref.shape, 1)
        w_t = jnp.sum(jnp.where(slot_ids == s, wts_ref[...], 0.0),
                      axis=1, keepdims=True)            # (tT, 1)
        acc_ref[...] += w_t * y

    @pl.when(s == pl.num_programs(1) - 1)
    def _finalize():
        o_ref[...] = acc_ref[...].astype(o_ref.dtype)


# ----------------------------- wrapper --------------------------------------

def fused_moe_pallas(x, w1, w2, slot_id, num_active, slot_weights):
    """x: (T,H); w1: (E,2I,H); w2: (E,H,I); slot_id: (E,) int32 sorted active
    expert ids (tail padded by repeating the last active id); num_active: (1,)
    int32; slot_weights: (T,E) f32 routing weight of token t for slot s."""
    T, H = x.shape
    E, two_i, _ = w1.shape
    inter = w2.shape[-1]

    # bf16 operands for MXU / halved weight DMA; accumulation stays f32.
    x_bf = x.astype(jnp.bfloat16)
    w1_bf = w1.astype(jnp.bfloat16)
    w2_bf = w2.astype(jnp.bfloat16)

    # Token tiling: parallel axis (megacore on v7x); expert/reduction axis last.
    token_tile = 256 if (T > 256 and T % 256 == 0) else T
    n_tt = T // token_tile
    # TODO(synk): for production Aria sizes on v7x (64 MiB VMEM), add a grid
    # axis over the 2I / I dims so per-step weight tiles stay a few MiB.

    # Explicit VMEM plan: double-buffered weight blocks + resident tiles + headroom.
    w1_blk = two_i * H * 2
    w2_blk = H * inter * 2
    resident = token_tile * H * (2 + x.dtype.itemsize + 4) + token_tile * E * 4
    vmem_bytes = int(min(2 * (w1_blk + w2_blk) + resident + (16 << 20),
                         100 * 1024 * 1024))

    cost = pl.CostEstimate(
        flops=2 * T * (two_i + inter) * H * E,
        transcendentals=T * inter * E,
        bytes_accessed=E * (w1_blk + w2_blk)
        + T * H * (2 + 2 * x.dtype.itemsize) + T * E * 4,
    )

    return pl.pallas_call(
        _moe_kernel,
        out_shape=jax.ShapeDtypeStruct((T, H), x.dtype),
        grid_spec=pltpu.PrefetchScalarGridSpec(
            num_scalar_prefetch=2,
            grid=(n_tt, E),
            in_specs=[
                pl.BlockSpec((token_tile, H), lambda i, s, eid, na: (i, 0)),
                pl.BlockSpec((1, two_i, H), lambda i, s, eid, na: (eid[s], 0, 0)),
                pl.BlockSpec((1, H, inter), lambda i, s, eid, na: (eid[s], 0, 0)),
                pl.BlockSpec((token_tile, E), lambda i, s, eid, na: (i, 0)),
            ],
            out_specs=pl.BlockSpec((token_tile, H), lambda i, s, eid, na: (i, 0)),
            scratch_shapes=[pltpu.VMEM((token_tile, H), jnp.float32)],
        ),
        compiler_params=pltpu.CompilerParams(
            dimension_semantics=("parallel", "arbitrary"),
            vmem_limit_bytes=vmem_bytes),
        cost_estimate=cost,
    )(slot_id, num_active, x_bf, w1_bf, w2_bf, slot_weights)


def experts_forward(hidden_states, router_weight, w1, w2, topk):
    orig_shape = hidden_states.shape
    x = hidden_states.reshape(-1, orig_shape[-1])
    T, H = x.shape
    E = router_weight.shape[0]

    # Router: tiny (T,H)@(H,E) GEMM (E << 128 lanes) -> plain XLA, not Pallas.
    logits = jnp.dot(x.astype(jnp.float32), router_weight.astype(jnp.float32).T)

    # custom_routing_function: top-k over experts, fp32 softmax, no renormalize.
    top_logits, top_idx = jax.lax.top_k(logits, topk)
    scores = jax.nn.softmax(top_logits.astype(jnp.float32), axis=-1)   # (T, k)

    # Dense (T, E) routing weights (top_k indices are distinct per row).
    dense = jnp.zeros((T, E), jnp.float32)
    dense = dense.at[jnp.arange(T)[:, None], top_idx].set(scores)

    # Compact, sorted active-expert list.  The tail repeats the last active id
    # so consecutive identical block indices elide the weight DMA; padded slots
    # carry zero routing weight and are compute-skipped in-kernel.
    counts = jnp.zeros((E,), jnp.int32).at[top_idx.reshape(-1)].add(1)
    num_active = jnp.sum((counts > 0).astype(jnp.int32))
    sorted_ids = jnp.sort(jnp.where(counts > 0, jnp.arange(E, dtype=jnp.int32), E))
    last_active = sorted_ids[jnp.maximum(num_active - 1, 0)]
    slot_pos = jnp.arange(E, dtype=jnp.int32)
    slot_id = jnp.where(slot_pos < num_active, sorted_ids, last_active)
    slot_id = slot_id.astype(jnp.int32)
    slot_weights = jnp.where(slot_pos[None, :] < num_active,
                             dense[:, slot_id], 0.0)                   # (T, E)

    out = fused_moe_pallas(x, w1, w2, slot_id,
                           num_active.reshape(1).astype(jnp.int32),
                           slot_weights)

    # TODO(synk): tensor_model_parallel_all_reduce is the identity for tp_size == 1.
    return out.reshape(orig_shape)


# ----------------------------- pure-JAX reference ---------------------------

def experts_reference(x, router_weight, w1, w2, topk):
    logits = x @ router_weight.T
    top_logits, top_idx = jax.lax.top_k(logits, topk)
    scores = jax.nn.softmax(top_logits.astype(jnp.float32), axis=-1)
    inter = w2.shape[-1]
    out = jnp.zeros_like(x)
    for k in range(topk):
        e = top_idx[:, k]
        h1 = jnp.einsum('th,tih->ti', x, w1[e])
        act = jax.nn.silu(h1[:, :inter]) * h1[:, inter:]
        y = jnp.einsum('ti,thi->th', act, w2[e])
        out = out + scores[:, k:k + 1] * y
    return out


# ----------------------------- main -----------------------------------------

if __name__ == "__main__":
    # Small config consistent with AriaMoELMConfig / Experts.__init__ (tp_size=1)
    hidden_size = 128
    moe_intermediate_size = 128
    moe_num_experts = 8
    moe_topk = 2
    num_tokens = 16

    key = jax.random.PRNGKey(0)
    k_x, k_rw, k_w1, k_w2 = jax.random.split(key, 4)

    hidden_states = jax.random.normal(k_x, (num_tokens, hidden_size), jnp.float32)
    router_weight = 0.05 * jax.random.normal(
        k_rw, (moe_num_experts, hidden_size), jnp.float32)
    w1 = 0.05 * jax.random.normal(
        k_w1, (moe_num_experts, 2 * moe_intermediate_size, hidden_size), jnp.float32)
    w2 = 0.05 * jax.random.normal(
        k_w2, (moe_num_experts, hidden_size, moe_intermediate_size), jnp.float32)

    out = experts_forward(hidden_states, router_weight, w1, w2, moe_topk)
    out = jax.block_until_ready(out)

    ref = experts_reference(hidden_states, router_weight, w1, w2, moe_topk)
    assert out.shape == hidden_states.shape
    max_err = jnp.max(jnp.abs(out - ref))
    # bf16 matmul operands vs f32 reference -> loose tolerance.
    assert jnp.allclose(out, ref, rtol=2e-2, atol=2e-2), f"max abs err {max_err}"

    print("KERNEL_OK")
</pallas_src>

<mosaic_0001>
module attributes {stable_mosaic.version = 11 : i64} {
  func.func @_moe_kernel(%arg0: i32, %arg1: i32, %arg2: memref<8xi32, #tpu.memory_space<smem>>, %arg3: memref<1xi32, #tpu.memory_space<smem>>, %arg4: memref<16x128xbf16, #tpu.memory_space<vmem>>, %arg5: memref<1x256x128xbf16, #tpu.memory_space<vmem>>, %arg6: memref<1x128x128xbf16, #tpu.memory_space<vmem>>, %arg7: memref<16x8xf32, #tpu.memory_space<vmem>>, %arg8: memref<16x128xf32, #tpu.memory_space<vmem>>, %arg9: memref<16x128xf32, #tpu.memory_space<vmem>>) attributes {dimension_semantics = [#tpu.dimension_semantics<parallel>, #tpu.dimension_semantics<arbitrary>], iteration_bounds = array<i64: 1, 8>, scalar_prefetch = 2 : i64, scratch_operands = 1 : i64, tpu.core_type = #tpu.core_type<tc>, window_params = [{transform_indices = @transform_0, window_bounds = array<i64: 16, 128>}, {transform_indices = @transform_1, window_bounds = array<i64: 1, 256, 128>}, {transform_indices = @transform_2, window_bounds = array<i64: 1, 128, 128>}, {transform_indices = @transform_3, window_bounds = array<i64: 16, 8>}, {transform_indices = @transform_4, window_bounds = array<i64: 16, 128>}]} {
    %c0_i32 = arith.constant 0 : i32
    %0 = arith.cmpi eq, %arg1, %c0_i32 : i32
    %1 = arith.extui %0 : i1 to i32
    %c0_i32_0 = arith.constant 0 : i32
    %2 = arith.cmpi ne, %1, %c0_i32_0 : i32
    scf.if %2 {
      %cst = arith.constant 0.000000e+00 : f32
      %10 = vector.broadcast %cst : f32 to vector<16x128xf32>
      %c0_3 = arith.constant 0 : index
      %c0_4 = arith.constant 0 : index
      %11 = vector.load %arg9[%c0_3, %c0_4] : memref<16x128xf32, #tpu.memory_space<vmem>>, vector<16x128xf32>
      tpu.vector_store %arg9[%c0_3, %c0_4], %10 {strides = array<i32>} : memref<16x128xf32, #tpu.memory_space<vmem>>, vector<16x128xf32>,
    } else {
    }
    %c0 = arith.constant 0 : index
    %3 = memref.load %arg3[%c0] : memref<1xi32, #tpu.memory_space<smem>>
    %4 = arith.cmpi slt, %arg1, %3 : i32
    %5 = arith.extui %4 : i1 to i32
    %c0_i32_1 = arith.constant 0 : i32
    %6 = arith.cmpi ne, %5, %c0_i32_1 : i32
    scf.if %6 {
      %c0_3 = arith.constant 0 : index
      %c0_4 = arith.constant 0 : index
      %10 = vector.load %arg4[%c0_3, %c0_4] : memref<16x128xbf16, #tpu.memory_space<vmem>>, vector<16x128xbf16>
      %c0_5 = arith.constant 0 : index
      %c0_6 = arith.constant 0 : index
      %c0_7 = arith.constant 0 : index
      %11 = vector.load %arg5[%c0_5, %c0_6, %c0_7] : memref<1x256x128xbf16, #tpu.memory_space<vmem>>, vector<1x256x128xbf16>
      %12 = vector.shape_cast %11 : vector<1x256x128xbf16> to vector<256x128xbf16>
      %cst = arith.constant dense<0.000000e+00> : vector<16x256xf32>
      %13 = tpu.matmul %10, %12, %cst {dimension_numbers = #tpu.dot_dimension_numbers<[1], [1], [0], [0], [0, 0, 1, 0], [], []>} : vector<16x128xbf16>, vector<256x128xbf16>, vector<16x256xf32> -> vector<16x256xf32>
      %14 = vector.extract_strided_slice %13 {offsets = [0, 0], sizes = [16, 128], strides = [1, 1]} : vector<16x256xf32> to vector<16x128xf32>
      %15 = vector.extract_strided_slice %13 {offsets = [0, 128], sizes = [16, 128], strides = [1, 1]} : vector<16x256xf32> to vector<16x128xf32>
      %16 = arith.negf %14 : vector<16x128xf32>
      %17 = math.exp %16 : vector<16x128xf32>
      %cst_8 = arith.constant 1.000000e+00 : f32
      %18 = vector.broadcast %cst_8 : f32 to vector<16x128xf32>
      %19 = arith.addf %18, %17 : vector<16x128xf32>
      %20 = arith.divf %18, %19 : vector<16x128xf32>
      %21 = arith.mulf %14, %20 : vector<16x128xf32>
      %22 = arith.mulf %21, %15 : vector<16x128xf32>
      %c0_9 = arith.constant 0 : index
      %c0_10 = arith.constant 0 : index
      %c0_11 = arith.constant 0 : index
      %23 = vector.load %arg6[%c0_9, %c0_10, %c0_11] : memref<1x128x128xbf16, #tpu.memory_space<vmem>>, vector<1x128x128xbf16>
      %24 = vector.shape_cast %23 : vector<1x128x128xbf16> to vector<128x128xbf16>
      %25 = arith.truncf %22 : vector<16x128xf32> to vector<16x128xbf16>
      %cst_12 = arith.constant dense<0.000000e+00> : vector<16x128xf32>
      %26 = tpu.matmul %25, %24, %cst_12 {dimension_numbers = #tpu.dot_dimension_numbers<[1], [1], [0], [0], [0, 0, 1, 0], [], []>} : vector<16x128xbf16>, vector<128x128xbf16>, vector<16x128xf32> -> vector<16x128xf32>
      %27 = tpu.iota {dimensions = array<i32: 1>} : vector<16x8xi32>
      %28 = vector.broadcast %arg1 : i32 to vector<16x8xi32>
      %29 = arith.cmpi eq, %27, %28 : vector<16x8xi32>
      %c0_13 = arith.constant 0 : index
      %c0_14 = arith.constant 0 : index
      %30 = vector.load %arg7[%c0_13, %c0_14] : memref<16x8xf32, #tpu.memory_space<vmem>>, vector<16x8xf32>
      %cst_15 = arith.constant 0.000000e+00 : f32
      %31 = vector.broadcast %cst_15 : f32 to vector<16x8xf32>
      %32 = arith.select %29, %30, %31 : vector<16x8xi1>, vector<16x8xf32>
      %cst_16 = arith.constant dense<0.000000e+00> : vector<16xf32>
      %33 = vector.multi_reduction <add>, %32, %cst_16 [1] : vector<16x8xf32> to vector<16xf32>
      %34 = vector.shape_cast %33 : vector<16xf32> to vector<16x1xf32>
      %c0_17 = arith.constant 0 : index
      %c0_18 = arith.constant 0 : index
      %35 = vector.load %arg9[%c0_17, %c0_18] : memref<16x128xf32, #tpu.memory_space<vmem>>, vector<16x128xf32>
      %36 = vector.broadcast %34 : vector<16x1xf32> to vector<16x128xf32>
      %37 = arith.mulf %36, %26 : vector<16x128xf32>
      %38 = arith.addf %35, %37 : vector<16x128xf32>
      %c0_19 = arith.constant 0 : index
      %c0_20 = arith.constant 0 : index
      %39 = vector.load %arg9[%c0_19, %c0_20] : memref<16x128xf32, #tpu.memory_space<vmem>>, vector<16x128xf32>
      tpu.vector_store %arg9[%c0_19, %c0_20], %38 {strides = array<i32>} : memref<16x128xf32, #tpu.memory_space<vmem>>, vector<16x128xf32>,
    } else {
    }
    %c7_i32 = arith.constant 7 : i32
    %7 = arith.cmpi eq, %arg1, %c7_i32 : i32
    %8 = arith.extui %7 : i1 to i32
    %c0_i32_2 = arith.constant 0 : i32
    %9 = arith.cmpi ne, %8, %c0_i32_2 : i32
    scf.if %9 {
      %c0_3 = arith.constant 0 : index
      %c0_4 = arith.constant 0 : index
      %10 = vector.load %arg9[%c0_3, %c0_4] : memref<16x128xf32, #tpu.memory_space<vmem>>, vector<16x128xf32>
      %c0_5 = arith.constant 0 : index
      %c0_6 = arith.constant 0 : index
      %11 = vector.load %arg8[%c0_5, %c0_6] : memref<16x128xf32, #tpu.memory_space<vmem>>, vector<16x128xf32>
      tpu.vector_store %arg8[%c0_5, %c0_6], %10 {strides = array<i32>} : memref<16x128xf32, #tpu.memory_space<vmem>>, vector<16x128xf32>,
    } else {
    }
    return
  }
  func.func @transform_0(%arg0: i32, %arg1: i32, %arg2: memref<8xi32, #tpu.memory_space<smem>>, %arg3: memref<1xi32, #tpu.memory_space<smem>>) -> (i32, i32) {
    %c0_i32 = arith.constant 0 : i32
    %c0_i32_0 = arith.constant 0 : i32
    return %arg0, %c0_i32 : i32, i32
  }
  func.func @transform_1(%arg0: i32, %arg1: i32, %arg2: memref<8xi32, #tpu.memory_space<smem>>, %arg3: memref<1xi32, #tpu.memory_space<smem>>) -> (i32, i32, i32) {
    %0 = arith.index_cast %arg1 : i32 to index
    %1 = memref.load %arg2[%0] : memref<8xi32, #tpu.memory_space<smem>>
    %c0_i32 = arith.constant 0 : i32
    %c0_i32_0 = arith.constant 0 : i32
    %c0_i32_1 = arith.constant 0 : i32
    return %1, %c0_i32, %c0_i32_0 : i32, i32, i32
  }
  func.func @transform_2(%arg0: i32, %arg1: i32, %arg2: memref<8xi32, #tpu.memory_space<smem>>, %arg3: memref<1xi32, #tpu.memory_space<smem>>) -> (i32, i32, i32) {
    %0 = arith.index_cast %arg1 : i32 to index
    %1 = memref.load %arg2[%0] : memref<8xi32, #tpu.memory_space<smem>>
    %c0_i32 = arith.constant 0 : i32
    %c0_i32_0 = arith.constant 0 : i32
    %c0_i32_1 = arith.constant 0 : i32
    return %1, %c0_i32, %c0_i32_0 : i32, i32, i32
  }
  func.func @transform_3(%arg0: i32, %arg1: i32, %arg2: memref<8xi32, #tpu.memory_space<smem>>, %arg3: memref<1xi32, #tpu.memory_space<smem>>) -> (i32, i32) {
    %c0_i32 = arith.constant 0 : i32
    %c0_i32_0 = arith.constant 0 : i32
    return %arg0, %c0_i32 : i32, i32
  }
  func.func @transform_4(%arg0: i32, %arg1: i32, %arg2: memref<8xi32, #tpu.memory_space<smem>>, %arg3: memref<1xi32, #tpu.memory_space<smem>>) -> (i32, i32) {
    %c0_i32 = arith.constant 0 : i32
    %c0_i32_0 = arith.constant 0 : i32
    return %arg0, %c0_i32 : i32, i32
  }
}

</mosaic_0001>

<llo_original>
// kernel: tpu_custom_call.1
$region0: #{tpu_custom_call.1}
  #allocation0 [shape = 'u32[]', space=smem, size = 0x4, offset = 0x4, fixed_abs, tag = 'smem constant byte address 0x4 - core index']
  #allocation1 [shape = 'u32[144,128]{1,0:T(1,128)}', space=vmem, size = 0x12000, scoped, tag = 'internal scratch']
  #allocation2 [shape = 'f32[16,128]{1,0:T(8,128)}', space=vmem, size = 0x2000, scoped, tag = 'scratch operand']
  #allocation3 [shape = 's32[1]{0}', space=sflag, size = 0x4, scoped, tag = 'scoped memory for tpu_custom_call.1']
  #allocation4 [shape = 'u8[512]{0}', space=smem, size = 0x200, scoped, tag = 'prefetched SMEM operand 0']
  #allocation5 [shape = 's32[1]{0:T(128)S(6)}', space=smem, size = 0x200, scoped, tag = 'prefetched SMEM operand 1']
  %s0 = inlined_call_operand.vmem [shape: s32[8], index: 0, kind: input, shape index: {}]
  %s1 = inlined_call_operand.<no memory space> [shape: s32[1], index: 1, kind: input, shape index: {}]
  %s2 = inlined_call_operand.vmem [shape: bf16[16,128], index: 2, kind: input, shape index: {}]
  %s3 = inlined_call_operand.hbm [shape: bf16[8,256,128], index: 3, kind: input, shape index: {}]
  %s4 = inlined_call_operand.hbm [shape: bf16[8,128,128], index: 4, kind: input, shape index: {}]
  %s5 = inlined_call_operand.vmem [shape: f32[16,8], index: 5, kind: input, shape index: {}]
  %s6 = inlined_call_operand.hbm [shape: f32[16,128], index: 6, kind: output, shape index: {}]
  %s7 = sld [smem:[#allocation0]]
  $region69: #{tpu_custom_call.1} parent=0
    _
  %s9 = ssub.s32 1, %s7
  %s10 = scalar_select 0, %s9, %s7
  %s11 = sshll.u32 %s0, 4
  %s12 = int_to_ptr.vmem [resolvable:$true] %s11
  %14 = dma.vmem_to_smem %s12, 16, [#allocation4], [#allocation3]
  %15 = sst [smem:[#allocation5]] %s1
  %16 = dma.done [#allocation3], 16
  %17 = sfence
  $region1: #{tpu_custom_call.1} parent=0
    #allocation6 [shape = 'u8[131072]{0}', space=vmem, size = 0x20000, scoped, tag = 'input window, operand 3']
    #allocation7 [shape = 's32[2]{0}', space=sflag, size = 0x8, scoped, tag = 'scoped memory for tpu_custom_call.1']
    #allocation8 [shape = 's32[2]{0}', space=sflag, size = 0x8, scoped, tag = 'scoped memory for tpu_custom_call.1']
    #allocation9 [shape = 'u8[65536]{0}', space=vmem, size = 0x10000, scoped, tag = 'input window, operand 4']
    #allocation10 [shape = 's32[2]{0}', space=sflag, size = 0x8, scoped, tag = 'scoped memory for tpu_custom_call.1']
    #allocation11 [shape = 'u8[8192]{0}', space=vmem, size = 0x2000, scoped, tag = 'output window, operand 0, single buffered']
    %18 = vsyncpa [#allocation7], 0
    %s19 = scalar_lea.sflag [#allocation7], 1
    %20 = vsyncpa %s19, 0
    %21 = vsyncpa [#allocation10], 0
    %s22 = scalar_lea.sflag [#allocation10], 1
    %23 = vsyncpa %s22, 0
    %24 = vsyncpa [#allocation8], 0
    loop: start=0, step=1, limit=10
    $region2: #{tpu_custom_call.1} parent=1 // loop_pre_header
      _
    $region3: #{tpu_custom_call.1} parent=1 // loop_header
      %s26 = sphi 0, %s30
      %p27 = scmp.ge.s32.totalorder %s26, 10
      %s33 = sphi 0, %s45
      %s34 = sphi 0, %s41
      %s35 = sphi 0, %s33
      %s36 = sphi 0, %s34
      %s37 = sphi 0, %s35
      %s38 = sphi 0, %s36
      %s48 = sphi 0, %s50
      %s51 = sphi 0, %s48
      %s52 = sphi 0, %s51
      %s68 = sphi 0, %s52
      %s76 = sphi 0, %s78
      %s79 = sphi 0, %s76
      %s80 = sphi 0, %s79
      %s96 = sphi 0, %s80
      %s104 = sphi 0, %s106
      %s107 = sphi 0, %s104
      %s108 = sphi 0, %s107
      %s124 = sphi 0, %s108
      %s130 = sphi 0, %s132
      %s133 = sphi 0, %s130
      %s134 = sphi 0, %s133
      %s150 = sphi 0, %s134
      %s156 = sphi 0, %s158
      %s159 = sphi 0, %s156
      %s160 = sphi 0, %s159
      %s176 = sphi 0, %s160
    $region4: #{tpu_custom_call.1} parent=1 // loop_header_branch
      %29 = sbr.rel (%p27) target = $region8
    $region5: #{tpu_custom_call.1} parent=1 // loop_body
      %s31 = ssub.s32 %s26, 1
      %s32 = ssub.s32 %s26, 2
      %s39 = sadd.s32 1, %s34
      %p40 = scmp.ge.s32.totalorder %s39, 8
      %s41 = scalar_select %p40, 0, %s39
      %s42 = sadd.s32 1, %s33
      %s43 = scalar_select %p40, %s42, %s33
      %p44 = scmp.ge.s32.totalorder %s43, 1
      %s45 = scalar_select %p44, 0, %s43
      %s46 = ssub.s32 %s33, %s45
      %p47 = scmp.eq.s32.totalorder %s46, 0
      %s49 = sadd.s32 %s48, 1
      %s50 = scalar_select %p47, %s48, %s49
      %p53 = pneg %p47
      %p54 = scmp.eq.s32.totalorder %s26, 7
      %p55 = por %p53, %p54
      %p56 = scmp.ne.s32.totalorder %s48, %s51
      %p57 = scmp.eq.s32.totalorder %s26, 0
      %p58 = por %p56, %p57
      %p59 = scmp.ne.s32.totalorder %s48, %s51
      %p60 = scmp.eq.s32.totalorder %s31, 7
      %p61 = por %p59, %p60
      %p62 = scmp.ne.s32.totalorder %s51, %s52
      %p63 = scmp.eq.s32.totalorder %s31, 0
      %p64 = por %p62, %p63
      %p65 = scmp.ne.s32.totalorder %s51, %s52
      %p66 = scmp.eq.s32.totalorder %s32, 7
      %p67 = por %p65, %p66
      %p69 = scmp.ne.s32.totalorder %s52, %s68
      %p70 = scmp.eq.s32.totalorder %s32, 0
      %p71 = por %p69, %p70
      %s72 = sld [smem:[#allocation4 + %s34]]
      %s73 = sld [smem:[#allocation4 + %s41]]
      %s74 = ssub.s32 %s72, %s73
      %p75 = scmp.eq.s32.totalorder %s74, 0
      %s77 = sadd.s32 %s76, 1
      %s78 = scalar_select %p75, %s76, %s77
      %p81 = pneg %p75
      %p82 = scmp.eq.s32.totalorder %s26, 7
      %p83 = por %p81, %p82
      %p84 = scmp.ne.s32.totalorder %s76, %s79
      %p85 = scmp.eq.s32.totalorder %s26, 0
      %p86 = por %p84, %p85
      %p87 = scmp.ne.s32.totalorder %s76, %s79
      %p88 = scmp.eq.s32.totalorder %s31, 7
      %p89 = por %p87, %p88
      %p90 = scmp.ne.s32.totalorder %s79, %s80
      %p91 = scmp.eq.s32.totalorder %s31, 0
      %p92 = por %p90, %p91
      %p93 = scmp.ne.s32.totalorder %s79, %s80
      %p94 = scmp.eq.s32.totalorder %s32, 7
      %p95 = por %p93, %p94
      %p97 = scmp.ne.s32.totalorder %s80, %s96
      %p98 = scmp.eq.s32.totalorder %s32, 0
      %p99 = por %p97, %p98
      %s100 = sld [smem:[#allocation4 + %s34]]
      %s101 = sld [smem:[#allocation4 + %s41]]
      %s102 = ssub.s32 %s100, %s101
      %p103 = scmp.eq.s32.totalorder %s102, 0
      %s105 = sadd.s32 %s104, 1
      %s106 = scalar_select %p103, %s104, %s105
      %p109 = pneg %p103
      %p110 = scmp.eq.s32.totalorder %s26, 7
      %p111 = por %p109, %p110
      %p112 = scmp.ne.s32.totalorder %s104, %s107
      %p113 = scmp.eq.s32.totalorder %s26, 0
      %p114 = por %p112, %p113
      %p115 = scmp.ne.s32.totalorder %s104, %s107
      %p116 = scmp.eq.s32.totalorder %s31, 7
      %p117 = por %p115, %p116
      %p118 = scmp.ne.s32.totalorder %s107, %s108
      %p119 = scmp.eq.s32.totalorder %s31, 0
      %p120 = por %p118, %p119
      %p121 = scmp.ne.s32.totalorder %s107, %s108
      %p122 = scmp.eq.s32.totalorder %s32, 7
      %p123 = por %p121, %p122
      %p125 = scmp.ne.s32.totalorder %s108, %s124
      %p126 = scmp.eq.s32.totalorder %s32, 0
      %p127 = por %p125, %p126
      %s128 = ssub.s32 %s33, %s45
      %p129 = scmp.eq.s32.totalorder %s128, 0
      %s131 = sadd.s32 %s130, 1
      %s132 = scalar_select %p129, %s130, %s131
      %p135 = pneg %p129
      %p136 = scmp.eq.s32.totalorder %s26, 7
      %p137 = por %p135, %p136
      %p138 = scmp.ne.s32.totalorder %s130, %s133
      %p139 = scmp.eq.s32.totalorder %s26, 0
      %p140 = por %p138, %p139
      %p141 = scmp.ne.s32.totalorder %s130, %s133
      %p142 = scmp.eq.s32.totalorder %s31, 7
      %p143 = por %p141, %p142
      %p144 = scmp.ne.s32.totalorder %s133, %s134
      %p145 = scmp.eq.s32.totalorder %s31, 0
      %p146 = por %p144, %p145
      %p147 = scmp.ne.s32.totalorder %s133, %s134
      %p148 = scmp.eq.s32.totalorder %s32, 7
      %p149 = por %p147, %p148
      %p151 = scmp.ne.s32.totalorder %s134, %s150
      %p152 = scmp.eq.s32.totalorder %s32, 0
      %p153 = por %p151, %p152
      %s154 = ssub.s32 %s33, %s45
      %p155 = scmp.eq.s32.totalorder %s154, 0
      %s157 = sadd.s32 %s156, 1
      %s158 = scalar_select %p155, %s156, %s157
      %p161 = pneg %p155
      %p162 = scmp.eq.s32.totalorder %s26, 7
      %p163 = por %p161, %p162
      %p164 = scmp.ne.s32.totalorder %s156, %s159
      %p165 = scmp.eq.s32.totalorder %s26, 0
      %p166 = por %p164, %p165
      %p167 = scmp.ne.s32.totalorder %s156, %s159
      %p168 = scmp.eq.s32.totalorder %s31, 7
      %p169 = por %p167, %p168
      %p170 = scmp.ne.s32.totalorder %s159, %s160
      %p171 = scmp.eq.s32.totalorder %s31, 0
      %p172 = por %p170, %p171
      %p173 = scmp.ne.s32.totalorder %s159, %s160
      %p174 = scmp.eq.s32.totalorder %s32, 7
      %p175 = por %p173, %p174
      %p177 = scmp.ne.s32.totalorder %s160, %s176
      %p178 = scmp.eq.s32.totalorder %s32, 0
      %p179 = por %p177, %p178
      %p180 = scmp.le.s32.totalorder 1, %s26
      %p181 = scmp.lt.s32.totalorder %s26, 9
      %p182 = pnand %p180, %p181
      %p183 = pneg %p182
      // Predicated region
      $region9: #{tpu_custom_call.1} parent=5 // pred_check
        _
      $region10: #{tpu_custom_call.1} parent=5 // pred_check_branch
        %185 = sbr.rel (%p182) target = $region12
      $region11: #{tpu_custom_call.1} parent=5 // pred_region
        %s186 = ssub.s32 %s26, 1
        // Predicated region
        $region13: #{tpu_custom_call.1} parent=11 // pred_check
          %p187 = pneg %p64
        $region14: #{tpu_custom_call.1} parent=11 // pred_check_branch
          %189 = sbr.rel (%p187) target = $region16
        $region15: #{tpu_custom_call.1} parent=11 // pred_region
          %s190 = smul.u32 2, %s35
          %p191 = scmp.lt.s32.totalorder %s190, 1
          %s192 = scalar_select %p191, %s190, 1
          %s193 = smul.addr %s192, 4
          %s194 = scalar_lea.vmem %s2, %s193
          %s195 = smul.u32 2, %s35
        $region16: #{tpu_custom_call.1} parent=11 // pred_fallthru
          _
        // Predicated region
        $region17: #{tpu_custom_call.1} parent=11 // pred_check
          %p196 = pneg %p146
        $region18: #{tpu_custom_call.1} parent=11 // pred_check_branch
          %198 = sbr.rel (%p196) target = $region20
        $region19: #{tpu_custom_call.1} parent=11 // pred_region
          %s199 = smul.u32 2, %s35
          %p200 = scmp.lt.s32.totalorder %s199, 1
          %s201 = scalar_select %p200, %s199, 1
          %s202 = smul.addr %s201, 8
          %s203 = scalar_lea.vmem %s5, %s202
          %s204 = smul.u32 2, %s35
        $region20: #{tpu_custom_call.1} parent=11 // pred_fallthru
          _
      $region12: #{tpu_custom_call.1} parent=5 // pred_fallthru
        _
      %p205 = scmp.lt.s32.totalorder %s26, 8
      // Predicated region
      $region21: #{tpu_custom_call.1} parent=5 // pred_check
        %p206 = pneg %p205
      $region22: #{tpu_custom_call.1} parent=5 // pred_check_branch
        %208 = sbr.rel (%p206) target = $region24
      $region23: #{tpu_custom_call.1} parent=5 // pred_region
        // Predicated region
        $region25: #{tpu_custom_call.1} parent=23 // pred_check
          %p209 = pneg %p86
        $region26: #{tpu_custom_call.1} parent=23 // pred_check_branch
          %211 = sbr.rel (%p209) target = $region28
        $region27: #{tpu_custom_call.1} parent=23 // pred_region
          %s212 = sand.u32 %s76, 1
          %s213 = scalar_lea.sflag [#allocation7], %s212
          %s214 = sand.u32 %s76, 1
          %s215 = smul.addr %s214, 128
          %s216 = scalar_lea.vmem [#allocation6], %s215
          %s217 = sld [smem:[#allocation4 + %s34]]
          %s219 = ssub.s32 2048, 2048
          %220 = vsyncadd %s213, %s219
          %s221 = smul.addr %s217, 32
          %s222 = smul.addr %s221, 64
          %s223 = scalar_lea.hbm %s3, %s222
          %s224 = sshll.u32 %s216, 4
          %s225 = int_to_ptr.vmem [resolvable:$true] %s224
          %230 = dma.hbm_to_vmem [thread:$0]  %s223, 2048, %s225, %s213, 64, 64, 4
        $region28: #{tpu_custom_call.1} parent=23 // pred_fallthru
          _
        // Predicated region
        $region29: #{tpu_custom_call.1} parent=23 // pred_check
          %p231 = pneg %p114
        $region30: #{tpu_custom_call.1} parent=23 // pred_check_branch
          %233 = sbr.rel (%p231) target = $region32
        $region31: #{tpu_custom_call.1} parent=23 // pred_region
          %s234 = sand.u32 %s104, 1
          %s235 = scalar_lea.sflag [#allocation10], %s234
          %s236 = sand.u32 %s104, 1
          %s237 = smul.addr %s236, 64
          %s238 = scalar_lea.vmem [#allocation9], %s237
          %s239 = sld [smem:[#allocation4 + %s34]]
          %s241 = ssub.s32 1024, 1024
          %242 = vsyncadd %s235, %s241
          %s243 = smul.addr %s239, 16
          %s244 = smul.addr %s243, 64
          %s245 = scalar_lea.hbm %s4, %s244
          %s246 = sshll.u32 %s238, 4
          %s247 = int_to_ptr.vmem [resolvable:$true] %s246
          %252 = dma.hbm_to_vmem [thread:$0]  %s245, 1024, %s247, %s235, 64, 64, 4
        $region32: #{tpu_custom_call.1} parent=23 // pred_fallthru
          _
      $region24: #{tpu_custom_call.1} parent=5 // pred_fallthru
        _
      %p253 = scmp.le.s32.totalorder 1, %s26
      %p254 = scmp.lt.s32.totalorder %s26, 9
      %p255 = pnand %p253, %p254
      %p256 = pneg %p255
      // Predicated region
      $region33: #{tpu_custom_call.1} parent=5 // pred_check
        _
      $region34: #{tpu_custom_call.1} parent=5 // pred_check_branch
        %258 = sbr.rel (%p255) target = $region36
      $region35: #{tpu_custom_call.1} parent=5 // pred_region
        %s259 = ssub.s32 %s26, 1
        %s260 = sand.u32 %s79, 1
        %s261 = scalar_lea.sflag [#allocation7], %s260
        %s262 = sand.u32 %s79, 1
        %s263 = smul.addr %s262, 128
        %s264 = scalar_lea.vmem [#allocation6], %s263
        // Predicated region
        $region37: #{tpu_custom_call.1} parent=35 // pred_check
          %p265 = pneg %p92
        $region38: #{tpu_custom_call.1} parent=35 // pred_check_branch
          %267 = sbr.rel (%p265) target = $region40
        $region39: #{tpu_custom_call.1} parent=35 // pred_region
          %268 = dma.done %s261, 2048
        $region40: #{tpu_custom_call.1} parent=35 // pred_fallthru
          _
        %s269 = sand.u32 %s107, 1
        %s270 = scalar_lea.sflag [#allocation10], %s269
        %s271 = sand.u32 %s107, 1
        %s272 = smul.addr %s271, 64
        %s273 = scalar_lea.vmem [#allocation9], %s272
        // Predicated region
        $region41: #{tpu_custom_call.1} parent=35 // pred_check
          %p274 = pneg %p120
        $region42: #{tpu_custom_call.1} parent=35 // pred_check_branch
          %276 = sbr.rel (%p274) target = $region44
        $region43: #{tpu_custom_call.1} parent=35 // pred_region
          %277 = dma.done %s270, 1024
        $region44: #{tpu_custom_call.1} parent=35 // pred_fallthru
          _
        %s278 = smul.u32 2, %s35
        %p279 = scmp.lt.s32.totalorder %s278, 1
        %s280 = scalar_select %p279, %s278, 1
        %s281 = smul.addr %s280, 4
        %s282 = scalar_lea.vmem %s2, %s281
        %p283 = pneg %p64
        %p284 = pneg %p61
        %s285 = sand.u32 %s79, 1
        %s286 = scalar_lea.sflag [#allocation7], %s285
        %s287 = sand.u32 %s79, 1
        %s288 = smul.addr %s287, 128
        %s289 = scalar_lea.vmem [#allocation6], %s288
        %p290 = pneg %p92
        %p291 = pneg %p89
        %s292 = sand.u32 %s107, 1
        %s293 = scalar_lea.sflag [#allocation10], %s292
        %s294 = sand.u32 %s107, 1
        %s295 = smul.addr %s294, 64
        %s296 = scalar_lea.vmem [#allocation9], %s295
        %p297 = pneg %p120
        %p298 = pneg %p117
        %s299 = smul.u32 2, %s35
        %p300 = scmp.lt.s32.totalorder %s299, 1
        %s301 = scalar_select %p300, %s299, 1
        %s302 = smul.addr %s301, 8
        %s303 = scalar_lea.vmem %s5, %s302
        %p304 = pneg %p146
        %p305 = pneg %p143
        %p306 = pneg %p172
        %p307 = pneg %p169
        %s308 = smul.u32 2, %s35
        %p309 = scmp.lt.s32.totalorder %s308, 1
        %s310 = scalar_select %p309, %s308, 1
        %s311 = smul.addr %s310, 4
        %s312 = scalar_lea.vmem %s2, %s311
        %s313 = smul.u32 2, %s35
        %s314 = sld [smem:[#allocation4 + %s36]]
        %s315 = sld [smem:[#allocation4 + %s36]]
        %s316 = smul.u32 2, %s35
        %p317 = scmp.lt.s32.totalorder %s316, 1
        %s318 = scalar_select %p317, %s316, 1
        %s319 = smul.addr %s318, 8
        %s320 = scalar_lea.vmem %s5, %s319
        %s321 = smul.u32 2, %s35
        %s322 = smul.u32 2, %s35
        %p324 = scmp.eq.s32.totalorder %s36, 0
        // Predicated region
        $region45: #{tpu_custom_call.1} parent=35 // pred_check
          %p325 = pneg %p324
        $region46: #{tpu_custom_call.1} parent=35 // pred_check_branch
          %327 = sbr.rel (%p325) target = $region48
        $region47: #{tpu_custom_call.1} parent=35 // pred_region
          %328 = vst [vmem:[#allocation2] sm:$0xff] 0.0
          %329 = vst [vmem:[#allocation2 + $0x8] sm:$0xff] 0.0
        $region48: #{tpu_custom_call.1} parent=35 // pred_fallthru
          _
        %s330 = sld [smem:[#allocation5]]
        %p331 = scmp.lt.s32.totalorder %s36, %s330
        // Predicated region
        $region49: #{tpu_custom_call.1} parent=35 // pred_check
          %p332 = pneg %p331
        $region50: #{tpu_custom_call.1} parent=35 // pred_check_branch
          %334 = sbr.rel (%p332) target = $region52
        $region51: #{tpu_custom_call.1} parent=35 // pred_region
          %v335 = vld [vmem:[%s312] sm:$0xf]
          %v336 = vld [vmem:[%s312 + $0x4] sm:$0xf]
          %v337 = vld [vmem:[%s264] sm:$0xf]
          %v338 = vld [vmem:[%s264 + $0x4] sm:$0xf]
          %v339 = vld [vmem:[%s264 + $0x8] sm:$0xf]
          %v340 = vld [vmem:[%s264 + $0xc] sm:$0xf]
          %v341 = vld [vmem:[%s264 + $0x10] sm:$0xf]
          %v342 = vld [vmem:[%s264 + $0x14] sm:$0xf]
          %v343 = vld [vmem:[%s264 + $0x18] sm:$0xf]
          %v344 = vld [vmem:[%s264 + $0x1c] sm:$0xf]
          %v345 = vld [vmem:[%s264 + $0x20] sm:$0xf]
          %v346 = vld [vmem:[%s264 + $0x24] sm:$0xf]
          %v347 = vld [vmem:[%s264 + $0x28] sm:$0xf]
          %v348 = vld [vmem:[%s264 + $0x2c] sm:$0xf]
          %v349 = vld [vmem:[%s264 + $0x30] sm:$0xf]
          %v350 = vld [vmem:[%s264 + $0x34] sm:$0xf]
          %v351 = vld [vmem:[%s264 + $0x38] sm:$0xf]
          %v352 = vld [vmem:[%s264 + $0x3c] sm:$0xf]
          %v353 = vld [vmem:[%s264 + $0x40] sm:$0xf]
          %v354 = vld [vmem:[%s264 + $0x44] sm:$0xf]
          %v355 = vld [vmem:[%s264 + $0x48] sm:$0xf]
          %v356 = vld [vmem:[%s264 + $0x4c] sm:$0xf]
          %v357 = vld [vmem:[%s264 + $0x50] sm:$0xf]
          %v358 = vld [vmem:[%s264 + $0x54] sm:$0xf]
          %v359 = vld [vmem:[%s264 + $0x58] sm:$0xf]
          %v360 = vld [vmem:[%s264 + $0x5c] sm:$0xf]
          %v361 = vld [vmem:[%s264 + $0x60] sm:$0xf]
          %v362 = vld [vmem:[%s264 + $0x64] sm:$0xf]
          %v363 = vld [vmem:[%s264 + $0x68] sm:$0xf]
          %v364 = vld [vmem:[%s264 + $0x6c] sm:$0xf]
          %v365 = vld [vmem:[%s264 + $0x70] sm:$0xf]
          %v366 = vld [vmem:[%s264 + $0x74] sm:$0xf]
          %v367 = vld [vmem:[%s264 + $0x78] sm:$0xf]
          %v368 = vld [vmem:[%s264 + $0x7c] sm:$0xf]
          %v371 = vunpack.c.l.b16 %v335
          %v372 = vunpack.c.l.b16 %v336
          %v373 = vpack.c.b16 %v372, %v371
          %v407 = vunpack.c.l.b16 %v337
          %v408 = vunpack.c.l.b16 %v338
          %v409 = vunpack.c.l.b16 %v339
          %v410 = vunpack.c.l.b16 %v340
          %v411 = vunpack.c.l.b16 %v341
          %v412 = vunpack.c.l.b16 %v342
          %v413 = vunpack.c.l.b16 %v343
          %v414 = vunpack.c.l.b16 %v344
          %v415 = vunpack.c.l.b16 %v345
          %v416 = vunpack.c.l.b16 %v346
          %v417 = vunpack.c.l.b16 %v347
          %v418 = vunpack.c.l.b16 %v348
          %v419 = vunpack.c.l.b16 %v349
          %v420 = vunpack.c.l.b16 %v350
          %v421 = vunpack.c.l.b16 %v351
          %v422 = vunpack.c.l.b16 %v352
          %v423 = vunpack.c.l.b16 %v353
          %v424 = vunpack.c.l.b16 %v354
          %v425 = vunpack.c.l.b16 %v355
          %v426 = vunpack.c.l.b16 %v356
          %v427 = vunpack.c.l.b16 %v357
          %v428 = vunpack.c.l.b16 %v358
          %v429 = vunpack.c.l.b16 %v359
          %v430 = vunpack.c.l.b16 %v360
          %v431 = vunpack.c.l.b16 %v361
          %v432 = vunpack.c.l.b16 %v362
          %v433 = vunpack.c.l.b16 %v363
          %v434 = vunpack.c.l.b16 %v364
          %v435 = vunpack.c.l.b16 %v365
          %v436 = vunpack.c.l.b16 %v366
          %v437 = vunpack.c.l.b16 %v367
          %v438 = vunpack.c.l.b16 %v368
          %v439 = vpack.c.b16 %v408, %v407
          %v440 = vpack.c.b16 %v410, %v409
          %v441 = vpack.c.b16 %v412, %v411
          %v442 = vpack.c.b16 %v414, %v413
          %v443 = vpack.c.b16 %v416, %v415
          %v444 = vpack.c.b16 %v418, %v417
          %v445 = vpack.c.b16 %v420, %v419
          %v446 = vpack.c.b16 %v422, %v421
          %v447 = vpack.c.b16 %v424, %v423
          %v448 = vpack.c.b16 %v426, %v425
          %v449 = vpack.c.b16 %v428, %v427
          %v450 = vpack.c.b16 %v430, %v429
          %v451 = vpack.c.b16 %v432, %v431
          %v452 = vpack.c.b16 %v434, %v433
          %v453 = vpack.c.b16 %v436, %v435
          %v454 = vpack.c.b16 %v438, %v437
          %471 = vmatprep.subr.bf16.mxu0 0
          %472 = vmatpush1.bf16.xpose.msra.mxu0 %v446
          %473 = vmatprep.subr.bf16.mxu0 0
          %474 = vmatpush1.bf16.xpose.msra.mxu0 %v445
          %475 = vmatprep.subr.bf16.mxu0 0
          %476 = vmatpush1.bf16.xpose.msra.mxu0 %v444
          %477 = vmatprep.subr.bf16.mxu0 0
          %478 = vmatpush1.bf16.xpose.msra.mxu0 %v443
          %479 = vmatprep.subr.bf16.mxu0 0
          %480 = vmatpush1.bf16.xpose.msra.mxu0 %v442
          %481 = vmatprep.subr.bf16.mxu0 0
          %482 = vmatpush1.bf16.xpose.msra.mxu0 %v441
          %483 = vmatprep.subr.bf16.mxu0 0
          %484 = vmatpush1.bf16.xpose.msra.mxu0 %v440
          %485 = vmatprep.subr.bf16.mxu0 0
          %486 = vmatpush1.bf16.xpose.msra.mxu0 %v439
          %487 = vmatprep.subr.bf16.mxu0 0
          %488 = vmatpush2.bf16.xpose.msra.mxu0 %v454
          %489 = vmatprep.subr.bf16.mxu0 0
          %490 = vmatpush2.bf16.xpose.msra.mxu0 %v453
          %491 = vmatprep.subr.bf16.mxu0 0
          %492 = vmatpush2.bf16.xpose.msra.mxu0 %v452
          %493 = vmatprep.subr.bf16.mxu0 0
          %494 = vmatpush2.bf16.xpose.msra.mxu0 %v451
          %495 = vmatprep.subr.bf16.mxu0 0
          %496 = vmatpush2.bf16.xpose.msra.mxu0 %v450
          %497 = vmatprep.subr.bf16.mxu0 0
          %498 = vmatpush2.bf16.xpose.msra.mxu0 %v449
          %499 = vmatprep.subr.bf16.mxu0 0
          %500 = vmatpush2.bf16.xpose.msra.mxu0 %v448
          %501 = vmatprep.subr.bf16.mxu0 0
          %502 = vmatpush2.bf16.xpose.msra.mxu0 %v447
          %503 = vmatprep.mubr.bf16.mxu0 0
          %504 = vmatmul.mubr.bf16.gmra.mxu0 %v373
          %v505 = vpop.f32.mrf.mxu0
          %v506 = vadd.f32 0.0, %v505
          %v507 = vpop.f32.mrf.mxu0
          %v508 = vadd.f32 0.0, %v507
          %v509 = vpop.f32.mrf.mxu0
          %v510 = vadd.f32 0.0, %v509
          %v511 = vpop.f32.mrf.mxu0
          %v512 = vadd.f32 0.0, %v511
          %513 = vdwg.mxu0
          %v514 = vxor.u32 %v506, 2147483648
          %v515 = vxor.u32 %v510, 2147483648
          %v516 = vmul.f32 %v514, 1.442695
          %v517 = vpow.pop %v516
          %v518 = vmul.f32 %v515, 1.442695
          %v519 = vpow.pop %v518
          %v520 = vadd.f32 %v517, 1.0
          %v521 = vadd.f32 %v519, 1.0
          %v522 = vrcp.pop %v520
          %v523 = vmul.f32 1.0, %v522
          %v524 = vrcp.pop %v521
          %v525 = vmul.f32 1.0, %v524
          %v526 = vmul.f32 %v506, %v523
          %v527 = vmul.f32 %v510, %v525
          %v528 = vmul.f32 %v526, %v508
          %v529 = vmul.f32 %v527, %v512
          %v530 = vld [vmem:[%s273] sm:$0xf]
          %v531 = vld [vmem:[%s273 + $0x4] sm:$0xf]
          %v532 = vld [vmem:[%s273 + $0x8] sm:$0xf]
          %v533 = vld [vmem:[%s273 + $0xc] sm:$0xf]
          %v534 = vld [vmem:[%s273 + $0x10] sm:$0xf]
          %v535 = vld [vmem:[%s273 + $0x14] sm:$0xf]
          %v536 = vld [vmem:[%s273 + $0x18] sm:$0xf]
          %v537 = vld [vmem:[%s273 + $0x1c] sm:$0xf]
          %v538 = vld [vmem:[%s273 + $0x20] sm:$0xf]
          %v539 = vld [vmem:[%s273 + $0x24] sm:$0xf]
          %v540 = vld [vmem:[%s273 + $0x28] sm:$0xf]
          %v541 = vld [vmem:[%s273 + $0x2c] sm:$0xf]
          %v542 = vld [vmem:[%s273 + $0x30] sm:$0xf]
          %v543 = vld [vmem:[%s273 + $0x34] sm:$0xf]
          %v544 = vld [vmem:[%s273 + $0x38] sm:$0xf]
          %v545 = vld [vmem:[%s273 + $0x3c] sm:$0xf]
          %v546 = vpack.c.bf16 %v529, %v528
          %v563 = vunpack.c.l.b16 %v530
          %v564 = vunpack.c.l.b16 %v531
          %v565 = vunpack.c.l.b16 %v532
          %v566 = vunpack.c.l.b16 %v533
          %v567 = vunpack.c.l.b16 %v534
          %v568 = vunpack.c.l.b16 %v535
          %v569 = vunpack.c.l.b16 %v536
          %v570 = vunpack.c.l.b16 %v537
          %v571 = vunpack.c.l.b16 %v538
          %v572 = vunpack.c.l.b16 %v539
          %v573 = vunpack.c.l.b16 %v540
          %v574 = vunpack.c.l.b16 %v541
          %v575 = vunpack.c.l.b16 %v542
          %v576 = vunpack.c.l.b16 %v543
          %v577 = vunpack.c.l.b16 %v544
          %v578 = vunpack.c.l.b16 %v545
          %v579 = vpack.c.b16 %v564, %v563
          %v580 = vpack.c.b16 %v566, %v565
          %v581 = vpack.c.b16 %v568, %v567
          %v582 = vpack.c.b16 %v570, %v569
          %v583 = vpack.c.b16 %v572, %v571
          %v584 = vpack.c.b16 %v574, %v573
          %v585 = vpack.c.b16 %v576, %v575
          %v586 = vpack.c.b16 %v578, %v577
          %595 = vmatprep.subr.bf16.mxu0 0
          %596 = vmatpush1.bf16.xpose.msra.mxu0 %v586
          %597 = vmatprep.subr.bf16.mxu0 0
          %598 = vmatpush1.bf16.xpose.msra.mxu0 %v585
          %599 = vmatprep.subr.bf16.mxu0 0
          %600 = vmatpush1.bf16.xpose.msra.mxu0 %v584
          %601 = vmatprep.subr.bf16.mxu0 0
          %602 = vmatpush1.bf16.xpose.msra.mxu0 %v583
          %603 = vmatprep.subr.bf16.mxu0 0
          %604 = vmatpush1.bf16.xpose.msra.mxu0 %v582
          %605 = vmatprep.subr.bf16.mxu0 0
          %606 = vmatpush1.bf16.xpose.msra.mxu0 %v581
          %607 = vmatprep.subr.bf16.mxu0 0
          %608 = vmatpush1.bf16.xpose.msra.mxu0 %v580
          %609 = vmatprep.subr.bf16.mxu0 0
          %610 = vmatpush1.bf16.xpose.msra.mxu0 %v579
          %611 = vmatprep.subr.bf16.mxu0 0
          %612 = vmatpush2.bf16.xpose.msra.mxu0 0
          %613 = vmatprep.subr.bf16.mxu0 0
          %614 = vmatpush2.bf16.xpose.msra.mxu0 0
          %615 = vmatprep.subr.bf16.mxu0 0
          %616 = vmatpush2.bf16.xpose.msra.mxu0 0
          %617 = vmatprep.subr.bf16.mxu0 0
          %618 = vmatpush2.bf16.xpose.msra.mxu0 0
          %619 = vmatprep.subr.bf16.mxu0 0
          %620 = vmatpush2.bf16.xpose.msra.mxu0 0
          %621 = vmatprep.subr.bf16.mxu0 0
          %622 = vmatpush2.bf16.xpose.msra.mxu0 0
          %623 = vmatprep.subr.bf16.mxu0 0
          %624 = vmatpush2.bf16.xpose.msra.mxu0 0
          %625 = vmatprep.subr.bf16.mxu0 0
          %626 = vmatpush2.bf16.xpose.msra.mxu0 0
          %627 = vmatprep.mubr.bf16.mxu0 0
          %628 = vmatmul.mubr.bf16.gmra.mxu0 %v546
          %v629 = vpop.f32.mrf.mxu0
          %v630 = vadd.f32 0.0, %v629
          %v631 = vpop.f32.mrf.mxu0
          %v632 = vpop.f32.mrf.mxu0
          %v633 = vadd.f32 0.0, %v632
          %v634 = vpop.f32.mrf.mxu0
          %635 = vdwg.mxu0
          %v636 = vlaneseq
          %v637 = vand.u32 %v636, 127
          %v638 = vstv %s36
          %vm639 = vcmp.eq.s32.totalorder %v637, %v638
          %v640 = vld [vmem:[%s320] sm:$0xff]
          %v641 = vld [vmem:[%s320 + $0x8] sm:$0xff]
          %v642 = vsel %vm639, %v640, 0.0
          %v643 = vsel %vm639, %v641, 0.0
          %vm644 = vcmask 64512
          %v645 = vsel %vm644, %v642, 0.0
          %646 = vadd.xlane.f32.xlu0 %v645
          %v647 = vpop.xlane.xlu0 %646
          %v648 = vsel %vm644, %v643, 0.0
          %649 = vadd.xlane.f32.xlu0 %v648
          %v650 = vpop.xlane.xlu0 %649
          %v651 = vld [vmem:[#allocation2] sm:$0xff]
          %v652 = vld [vmem:[#allocation2 + $0x8] sm:$0xff]
          %v653 = vmul.f32 %v647, %v630
          %v654 = vmul.f32 %v650, %v633
          %v655 = vadd.f32 %v651, %v653
          %v656 = vadd.f32 %v652, %v654
          %657 = vst [vmem:[#allocation2] sm:$0xff] %v655
          %658 = vst [vmem:[#allocation2 + $0x8] sm:$0xff] %v656
        $region52: #{tpu_custom_call.1} parent=35 // pred_fallthru
          _
        %p659 = scmp.eq.s32.totalorder %s36, 7
        // Predicated region
        $region53: #{tpu_custom_call.1} parent=35 // pred_check
          %p660 = pneg %p659
        $region54: #{tpu_custom_call.1} parent=35 // pred_check_branch
          %662 = sbr.rel (%p660) target = $region56
        $region55: #{tpu_custom_call.1} parent=35 // pred_region
          %v663 = vld [vmem:[#allocation2] sm:$0xff]
          %v664 = vld [vmem:[#allocation2 + $0x8] sm:$0xff]
          %665 = vst [vmem:[#allocation11] sm:$0xff] %v663
          %666 = vst [vmem:[#allocation11 + $0x8] sm:$0xff] %v664
        $region56: #{tpu_custom_call.1} parent=35 // pred_fallthru
          _
        // Predicated region
        $region57: #{tpu_custom_call.1} parent=35 // pred_check
          %p667 = pneg %p169
        $region58: #{tpu_custom_call.1} parent=35 // pred_check_branch
          %669 = sbr.rel (%p667) target = $region60
        $region59: #{tpu_custom_call.1} parent=35 // pred_region
          %s670 = smul.u32 2, %s35
          %s672 = ssub.s32 256, 256
          %673 = vsyncadd [#allocation8], %s672
          %s674 = smul.addr %s670, 128
          %s675 = scalar_lea.hbm %s6, %s674
          %s676 = sshll.u32 [#allocation11], 4
          %s677 = int_to_ptr.vmem [resolvable:$true] %s676
          %682 = dma.vmem_to_hbm [thread:$0]  %s677, 256, %s675, [#allocation8], 128, 128, 8
        $region60: #{tpu_custom_call.1} parent=35 // pred_fallthru
          _
        // Predicated region
        $region61: #{tpu_custom_call.1} parent=35 // pred_check
          %p683 = pneg %p169
        $region62: #{tpu_custom_call.1} parent=35 // pred_check_branch
          %685 = sbr.rel (%p683) target = $region64
        $region63: #{tpu_custom_call.1} parent=35 // pred_region
          %686 = dma.done [#allocation8], 256
        $region64: #{tpu_custom_call.1} parent=35 // pred_fallthru
          _
      $region36: #{tpu_custom_call.1} parent=5 // pred_fallthru
        _
      %p687 = scmp.le.s32.totalorder 2, %s26
      // Predicated region
      $region65: #{tpu_custom_call.1} parent=5 // pred_check
        %p688 = pneg %p687
      $region66: #{tpu_custom_call.1} parent=5 // pred_check_branch
        %690 = sbr.rel (%p688) target = $region68
      $region67: #{tpu_custom_call.1} parent=5 // pred_region
        %s691 = ssub.s32 %s26, 2
      $region68: #{tpu_custom_call.1} parent=5 // pred_fallthru
        _
    $region6: #{tpu_custom_call.1} parent=1 // loop_footer
      %s30 = sadd.s32 1, %s26
    $region7: #{tpu_custom_call.1} parent=1 // loop_footer_branch
      %25 = sbr.rel target = $region3
    $region8: #{tpu_custom_call.1} parent=1 // loop_exit
      _
    %692 = vsyncpa [#allocation7], 1
    %s693 = scalar_lea.sflag [#allocation7], 1
    %694 = vsyncpa %s693, 1
    %695 = vsyncpa [#allocation10], 1
    %s696 = scalar_lea.sflag [#allocation10], 1
    %697 = vsyncpa %s696, 1
    %698 = vsyncpa [#allocation8], 1
    %s699 = scalar_lea.sflag [#allocation8], 1
    %700 = vsyncpa %s699, 1

</llo_original>
